<compile_context>
chip_gen: v5e
topology: v5e:2x2
jax: 0.10.0
libtpu: 0.0.40
codegen_flags: <defaults>
</compile_context>

<pallas_src>
import math

import jax
import jax.numpy as jnp
from jax.experimental import pallas as pl
from jax.experimental.pallas import tpu as pltpu


def _linear_kernel(x_ref, w_ref, b_ref, o_ref):
    # x_ref: (tm, Kr), w_ref: (Kr, Nr), b_ref: (1, Nr) f32, o_ref: (tm, Nr)
    acc = jnp.dot(x_ref[...], w_ref[...], preferred_element_type=jnp.float32)
    o_ref[...] = (acc + b_ref[...]).astype(o_ref.dtype)


def _round_up(n: int, m: int) -> int:
    return ((n + m - 1) // m) * m


def _vmem_limit_bytes() -> int:
    # Half the physical VMEM, capped at 64 MiB:
    #   v5e/v6e (128 MiB) -> 64 MiB, v7x (64 MiB) -> 32 MiB.
    try:
        cap = int(pltpu.get_tpu_info().vmem_capacity_bytes)
    except Exception:
        cap = 64 * 1024 * 1024  # conservative (v7x-sized) fallback
    return min(64 * 1024 * 1024, cap // 2)


def _choose_tm(Mr: int, Kr: int, Nr: int, in_itemsize: int, out_itemsize: int,
               buffer_budget: int) -> int:
    lane_k = _round_up(Kr, 128)  # the x tile lane-pads Kr up to a multiple of 128 in VMEM
    per_row = (2 * Nr * out_itemsize       # double-buffered output tile
               + 2 * lane_k * in_itemsize  # double-buffered (lane-padded) x tile
               + Nr * 4)                   # one f32 intermediate tile
    tm = max(8, min(4096, (buffer_budget // per_row) // 8 * 8))
    if Mr >= 16:
        # Ensure >= 2 grid steps so both v7x TensorCores get work.
        tm = min(tm, _round_up(pl.cdiv(Mr, 2), 8))
    if tm >= Mr:
        tm = Mr  # full-extent block is legal even when Mr is not a multiple of 8
    return tm


@jax.jit
def time_feature_embedding(x: jax.Array, weight: jax.Array, bias: jax.Array) -> jax.Array:
    """Equivalent of TimeFeatureEmbedding.forward: x @ weight.T + bias.

    x:      (B, L, num_time_features)
    weight: (d_model, num_time_features)   -- PyTorch nn.Linear layout
    bias:   (d_model,)
    returns (B, L, d_model) in x.dtype
    """
    B, L, K = x.shape
    d_model, Kw = weight.shape
    assert K == Kw, (K, Kw)

    M = B * L
    out_dtype = x.dtype
    compute_dtype = x.dtype  # keep native dtype; MXU accumulates in f32

    # Row-folding factor: fold r consecutive rows per output row so the output
    # lane width is (ideally) a multiple of 128.  r must divide M.
    r = math.gcd(max(1, 128 // d_model), M) if d_model < 128 else 1
    Mr, Kr, Nr = M // r, r * K, r * d_model

    x2 = x.reshape(Mr, Kr)                          # free: row-major bytes identical
    w_t = weight.T.astype(compute_dtype)            # (K, d_model)
    if r > 1:
        # Block-diagonal folded weight: (Kr, Nr).
        w_t = jnp.kron(jnp.eye(r, dtype=compute_dtype), w_t)
    b2 = jnp.tile(bias.astype(jnp.float32).reshape(1, d_model), (1, r))  # (1, Nr) f32

    in_itemsize = jnp.dtype(compute_dtype).itemsize
    out_itemsize = jnp.dtype(out_dtype).itemsize
    vmem_limit = _vmem_limit_bytes()
    tm = _choose_tm(Mr, Kr, Nr, in_itemsize, out_itemsize, vmem_limit // 2)

    out = pl.pallas_call(
        _linear_kernel,
        out_shape=jax.ShapeDtypeStruct((Mr, Nr), out_dtype),
        grid_spec=pltpu.PrefetchScalarGridSpec(
            num_scalar_prefetch=0,
            grid=(pl.cdiv(Mr, tm),),                      # ragged last block is masked
            in_specs=[
                pl.BlockSpec((tm, Kr), lambda i: (i, 0)),  # row tile of folded x
                pl.BlockSpec((Kr, Nr), lambda i: (0, 0)),  # resident folded W^T
                pl.BlockSpec((1, Nr), lambda i: (0, 0)),   # resident folded bias
            ],
            out_specs=pl.BlockSpec((tm, Nr), lambda i: (i, 0)),
        ),
        compiler_params=pltpu.CompilerParams(
            dimension_semantics=("parallel",),
            vmem_limit_bytes=vmem_limit,
        ),
        cost_estimate=pl.CostEstimate(
            flops=2 * M * K * d_model,
            bytes_accessed=(M * K * in_itemsize
                            + Kr * Nr * in_itemsize
                            + Nr * 4
                            + M * d_model * out_itemsize),
            transcendentals=0,
        ),
    )(x2, w_t, b2)

    return out.reshape(B, L, d_model)


def _reference(x: jax.Array, weight: jax.Array, bias: jax.Array) -> jax.Array:
    """Pure-JAX reference mirroring torch.nn.Linear."""
    return jnp.einsum("blk,dk->bld", x.astype(jnp.float32),
                      weight.astype(jnp.float32)) + bias.astype(jnp.float32)


if __name__ == "__main__":
    key = jax.random.PRNGKey(0)
    k_x, k_w, k_b = jax.random.split(key, 3)

    # Primary small-shape check (d_model < 128 -> exercises row folding).
    batch, seq = 2, 8
    num_time_features, d_model = 4, 32

    x = jax.random.normal(k_x, (batch, seq, num_time_features), dtype=jnp.float32)
    weight = jax.random.normal(k_w, (d_model, num_time_features), dtype=jnp.float32) * 0.1
    bias = jax.random.normal(k_b, (d_model,), dtype=jnp.float32) * 0.1

    out = jax.block_until_ready(time_feature_embedding(x, weight, bias))
    ref = _reference(x, weight, bias)
    assert out.shape == (batch, seq, d_model), out.shape
    assert out.dtype == x.dtype
    assert jnp.allclose(out, ref, atol=1e-5, rtol=1e-5)

    # Secondary check: multi-step grid with a ragged last block (no padding path).
    k_x2, k_w2, k_b2 = jax.random.split(jax.random.PRNGKey(1), 3)
    b2_, s2_, k2_, d2_ = 3, 40, 5, 128
    x_b = jax.random.normal(k_x2, (b2_, s2_, k2_), dtype=jnp.float32)
    w_b = jax.random.normal(k_w2, (d2_, k2_), dtype=jnp.float32) * 0.1
    bias_b = jax.random.normal(k_b2, (d2_,), dtype=jnp.float32) * 0.1
    out_b = jax.block_until_ready(time_feature_embedding(x_b, w_b, bias_b))
    assert jnp.allclose(out_b, _reference(x_b, w_b, bias_b), atol=1e-5, rtol=1e-5)

    print("KERNEL_OK")
</pallas_src>

<mosaic_0001>
module attributes {stable_mosaic.version = 11 : i64} {
  func.func @_linear_kernel(%arg0: i32, %arg1: memref<4x16xf32, #tpu.memory_space<vmem>>, %arg2: memref<16x128xf32, #tpu.memory_space<vmem>>, %arg3: memref<1x128xf32, #tpu.memory_space<vmem>>, %arg4: memref<4x128xf32, #tpu.memory_space<vmem>>) attributes {dimension_semantics = [#tpu.dimension_semantics<parallel>], iteration_bounds = array<i64: 1>, scalar_prefetch = 0 : i64, scratch_operands = 0 : i64, tpu.core_type = #tpu.core_type<tc>, window_params = [{transform_indices = @transform_0, window_bounds = array<i64: 4, 16>}, {pipeline_mode = #tpu.pipeline_mode<synchronous>, transform_indices = @transform_1, window_bounds = array<i64: 16, 128>}, {pipeline_mode = #tpu.pipeline_mode<synchronous>, transform_indices = @transform_2, window_bounds = array<i64: 1, 128>}, {transform_indices = @transform_3, window_bounds = array<i64: 4, 128>}]} {
    %c0 = arith.constant 0 : index
    %c0_0 = arith.constant 0 : index
    %0 = vector.load %arg1[%c0, %c0_0] : memref<4x16xf32, #tpu.memory_space<vmem>>, vector<4x16xf32>
    %c0_1 = arith.constant 0 : index
    %c0_2 = arith.constant 0 : index
    %1 = vector.load %arg2[%c0_1, %c0_2] : memref<16x128xf32, #tpu.memory_space<vmem>>, vector<16x128xf32>
    %cst = arith.constant dense<0.000000e+00> : vector<4x128xf32>
    %2 = tpu.matmul %0, %1, %cst {dimension_numbers = #tpu.dot_dimension_numbers<[1], [0], [0], [1], [0, 0, 1, 1], [], []>} : vector<4x16xf32>, vector<16x128xf32>, vector<4x128xf32> -> vector<4x128xf32>
    %c0_3 = arith.constant 0 : index
    %c0_4 = arith.constant 0 : index
    %3 = vector.load %arg3[%c0_3, %c0_4] : memref<1x128xf32, #tpu.memory_space<vmem>>, vector<1x128xf32>
    %4 = vector.broadcast %3 : vector<1x128xf32> to vector<4x128xf32>
    %5 = arith.addf %2, %4 : vector<4x128xf32>
    %c0_5 = arith.constant 0 : index
    %c0_6 = arith.constant 0 : index
    %6 = vector.load %arg4[%c0_5, %c0_6] : memref<4x128xf32, #tpu.memory_space<vmem>>, vector<4x128xf32>
    tpu.vector_store %arg4[%c0_5, %c0_6], %5 {strides = array<i32>} : memref<4x128xf32, #tpu.memory_space<vmem>>, vector<4x128xf32>,
    return
  }
  func.func @transform_0(%arg0: i32) -> (i32, i32) {
    %c0_i32 = arith.constant 0 : i32
    %c0_i32_0 = arith.constant 0 : i32
    return %arg0, %c0_i32 : i32, i32
  }
  func.func @transform_1(%arg0: i32) -> (i32, i32) {
    %c0_i32 = arith.constant 0 : i32
    %c0_i32_0 = arith.constant 0 : i32
    %c0_i32_1 = arith.constant 0 : i32
    return %c0_i32, %c0_i32_0 : i32, i32
  }
  func.func @transform_2(%arg0: i32) -> (i32, i32) {
    %c0_i32 = arith.constant 0 : i32
    %c0_i32_0 = arith.constant 0 : i32
    %c0_i32_1 = arith.constant 0 : i32
    return %c0_i32, %c0_i32_0 : i32, i32
  }
  func.func @transform_3(%arg0: i32) -> (i32, i32) {
    %c0_i32 = arith.constant 0 : i32
    %c0_i32_0 = arith.constant 0 : i32
    return %arg0, %c0_i32 : i32, i32
  }
}

</mosaic_0001>

<llo_original>
// kernel: time_feature_embedding.1
$region0: #{time_feature_embedding.1}
  #allocation0 [shape = 'u32[]', space=smem, size = 0x4, offset = 0x4, fixed_abs, tag = 'smem constant byte address 0x4 - core index']
  #allocation1 [shape = 'u32[72,128]{1,0:T(1,128)}', space=vmem, size = 0x9000, scoped, tag = 'internal scratch']
  %s0 = inlined_call_operand.vmem [shape: f32[4,16], index: 0, kind: input, shape index: {}]
  %s1 = inlined_call_operand.vmem [shape: f32[16,128], index: 1, kind: input, shape index: {}]
  %s2 = inlined_call_operand.vmem [shape: f32[1,128], index: 2, kind: input, shape index: {}]
  %s3 = inlined_call_operand.vmem [shape: f32[4,128], index: 3, kind: output, shape index: {}]
  %s4 = sld [smem:[#allocation0]]
  $region22: #{time_feature_embedding.1} parent=0
    _
  %s6 = ssub.s32 1, %s4
  %s7 = scalar_select 0, %s6, %s4
  // Predicated region
  $region2: #{time_feature_embedding.1} parent=0 // pred_check
    _
  $region3: #{time_feature_embedding.1} parent=0 // pred_check_branch
    %9 = sbr.rel (0) target = $region5
  $region4: #{time_feature_embedding.1} parent=0 // pred_region
    _
  $region5: #{time_feature_embedding.1} parent=0 // pred_fallthru
    _
  // Predicated region
  $region6: #{time_feature_embedding.1} parent=0 // pred_check
    _
  $region7: #{time_feature_embedding.1} parent=0 // pred_check_branch
    %11 = sbr.rel (0) target = $region9
  $region8: #{time_feature_embedding.1} parent=0 // pred_region
    _
  $region9: #{time_feature_embedding.1} parent=0 // pred_fallthru
    _
  // Predicated region
  $region10: #{time_feature_embedding.1} parent=0 // pred_check
    _
  $region11: #{time_feature_embedding.1} parent=0 // pred_check_branch
    %13 = sbr.rel (0) target = $region13
  $region12: #{time_feature_embedding.1} parent=0 // pred_region
    _
  $region13: #{time_feature_embedding.1} parent=0 // pred_fallthru
    _
  %v14 = vld [vmem:[%s0] sm:$0xf]
  %v15 = vld [vmem:[%s1] sm:$0xff]
  %v16 = vld [vmem:[%s1 + $0x8] sm:$0xff]
  %v17 = vld [vmem:[%s2] sm:$0x1]
  %v19 = vperm.slane %v17, 0
  %vm21 = vcmask 130048
  %v23 = vsel %vm21, %v14, 0
  %25 = vmatpush.msra.mxu0 0.0
  %26 = vmatpush.msra.mxu0 0.0
  %27 = vmatpush.msra.mxu0 0.0
  %28 = vmatpush.msra.mxu0 0.0
  %29 = vmatpush.msra.mxu0 0.0
  %30 = vmatpush.msra.mxu0 0.0
  %31 = vmatpush.msra.mxu0 0.0
  %32 = vmatpush.msra.mxu0 0.0
  %33 = vmatpush.msra.mxu0 0.0
  %34 = vmatpush.msra.mxu0 0.0
  %35 = vmatpush.msra.mxu0 0.0
  %36 = vmatpush.msra.mxu0 0.0
  %37 = vmatpush.msra.mxu0 0.0
  %38 = vmatpush.msra.mxu0 0.0
  %39 = vmatpush.msra.mxu0 %v16
  %40 = vmatpush.msra.mxu0 %v15
  %41 = vmatmul.f32.gmra.mxu0 %v23
  %v42 = vpop.f32.mrf.mxu0
  %v43 = vadd.f32 %v19, %v42
  %44 = vdwg.mxu0
  %45 = vst [vmem:[%s3] sm:$0xf] %v43
  // Predicated region
  $region14: #{time_feature_embedding.1} parent=0 // pred_check
    _
  $region15: #{time_feature_embedding.1} parent=0 // pred_check_branch
    %47 = sbr.rel (0) target = $region17
  $region16: #{time_feature_embedding.1} parent=0 // pred_region
    _
  $region17: #{time_feature_embedding.1} parent=0 // pred_fallthru
    _
  // Predicated region
  $region18: #{time_feature_embedding.1} parent=0 // pred_check
    _
  $region19: #{time_feature_embedding.1} parent=0 // pred_check_branch
    %49 = sbr.rel (0) target = $region21
  $region20: #{time_feature_embedding.1} parent=0 // pred_region
    _
  $region21: #{time_feature_embedding.1} parent=0 // pred_fallthru
    _

</llo_original>
